<compile_context>
chip_gen: v5e
topology: v5e:2x2
jax: 0.10.0
libtpu: 0.0.40
codegen_flags: <defaults>
</compile_context>

<pallas_src>
import functools

import jax
import jax.numpy as jnp
from jax.experimental import pallas as pl
from jax.experimental.pallas import tpu as pltpu

_LANES = 128          # TPU vreg lane width
_SUBLANES = 8         # TPU vreg sublane count (f32)
_MAX_TILE_ROWS = 512  # 512 x 128 f32 = 256 KiB per reg tile (double-buffered < 1 MiB)
_PAD_POS = 1e4        # pad value for pos: d = 1e4 -> softplus(-d) == 0 exactly in f32


def _cdiv(a, b):
    return -(-a // b)


def _round_up(a, b):
    return _cdiv(a, b) * b


def _fused_bpr_kernel(pos_ref, neg_ref, reg_ref, bpr_out_ref, reg_out_ref,
                      acc_ref, *, bpr_scale, reg_scale):
    """Fused reduction:
         bpr_out = bpr_scale * sum(log(sigmoid(pos - neg)))   (computed at step 0)
         reg_out = reg_scale * sum(reg ** 2)                  (accumulated over grid)
    """
    i = pl.program_id(0)

    @pl.when(i == 0)
    def _init():
        d = pos_ref[...].astype(jnp.float32) - neg_ref[...].astype(jnp.float32)
        # log(sigmoid(d)) == -softplus(-d); padded lanes have d = 1e4 -> contribute 0.
        bpr_out_ref[0, 0] = bpr_scale * jnp.sum(-jax.nn.softplus(-d))
        acc_ref[...] = jnp.zeros_like(acc_ref)

    x = reg_ref[...].astype(jnp.float32)
    acc_ref[...] = acc_ref[...] + jnp.sum(x * x)   # zero padding contributes 0

    @pl.when(i == pl.num_programs(0) - 1)
    def _finalize():
        reg_out_ref[0, 0] = jnp.sum(acc_ref[...] * reg_scale)


def _pack_lane_dense(flat, pad_value, row_multiple):
    """Pad a 1-D array and reshape to a lane-dense (rows, 128) layout."""
    n = flat.shape[0]
    rows = _round_up(max(_cdiv(n, _LANES), 1), row_multiple)
    flat = jnp.pad(flat, (0, rows * _LANES - n), constant_values=pad_value)
    return flat.reshape(rows, _LANES)


@functools.partial(jax.jit, static_argnames=("lamb_reg",))
def bpr_loss_forward(pos_preds, neg_preds, *reg_vars, lamb_reg=0.01):
    """Mirrors BPRLoss.forward(pos_preds, neg_preds, *reg_vars)."""
    batch_size = pos_preds.shape[0]

    # Lane/sublane-dense (rows, 128) layouts; original dtypes kept in HBM,
    # kernel casts to f32 only after the DMA.
    pos2 = _pack_lane_dense(pos_preds.reshape(-1), _PAD_POS, _SUBLANES)
    neg2 = _pack_lane_dense(neg_preds.reshape(-1), 0.0, _SUBLANES)

    if reg_vars:
        reg_flat = jnp.concatenate([jnp.ravel(v) for v in reg_vars])
    else:
        reg_flat = jnp.zeros((_LANES,), jnp.float32)

    # Pick a reg tile small enough for every generation's scoped-VMEM default,
    # then pad the flattened reg params to a whole number of tiles.
    reg_rows = _round_up(max(_cdiv(reg_flat.shape[0], _LANES), 1), _SUBLANES)
    tile_rows = min(_MAX_TILE_ROWS, reg_rows)
    num_tiles = _cdiv(reg_rows, tile_rows)
    rows_padded = num_tiles * tile_rows
    reg2 = jnp.pad(reg_flat, (0, rows_padded * _LANES - reg_flat.shape[0]))
    reg2 = reg2.reshape(rows_padded, _LANES)

    rows_bpr = pos2.shape[0]
    kernel = functools.partial(
        _fused_bpr_kernel,
        bpr_scale=-0.5 / batch_size,
        reg_scale=lamb_reg * 0.5 / batch_size,
    )

    bpr_out, reg_out = pl.pallas_call(
        kernel,
        grid=(num_tiles,),
        in_specs=[
            # pos/neg blocks stay resident across the whole reduction grid
            # (constant block index -> DMA'd once).
            pl.BlockSpec((rows_bpr, _LANES), lambda i: (0, 0)),
            pl.BlockSpec((rows_bpr, _LANES), lambda i: (0, 0)),
            # reg params stream through in (tile_rows, 128) tiles.
            pl.BlockSpec((tile_rows, _LANES), lambda i: (i, 0)),
        ],
        out_specs=(
            pl.BlockSpec((1, 1), lambda i: (0, 0),
                         memory_space=pltpu.MemorySpace.SMEM),
            pl.BlockSpec((1, 1), lambda i: (0, 0),
                         memory_space=pltpu.MemorySpace.SMEM),
        ),
        out_shape=(
            jax.ShapeDtypeStruct((1, 1), jnp.float32),
            jax.ShapeDtypeStruct((1, 1), jnp.float32),
        ),
        scratch_shapes=[pltpu.VMEM((1, 1), jnp.float32)],
        compiler_params=pltpu.CompilerParams(
            dimension_semantics=("arbitrary",)),
    )(pos2, neg2, reg2)

    bpr_loss = bpr_out[0, 0]
    reg_loss = reg_out[0, 0]
    loss = (bpr_loss + reg_loss).reshape(1)   # PyTorch reg_loss is shape (1,) -> loss is (1,)
    # Return device scalars (no .item()/float(): keeps the wrapper jittable and async).
    return loss, [bpr_loss, reg_loss]


if __name__ == "__main__":
    key = jax.random.PRNGKey(0)
    k1, k2, k3, k4 = jax.random.split(key, 4)

    batch = 8
    emb_dim = 16
    lamb_reg = 0.01

    pos_preds = jax.random.normal(k1, (batch,), dtype=jnp.float32)
    neg_preds = jax.random.normal(k2, (batch,), dtype=jnp.float32)
    # "parameters" to regularize (deterministic synthetic embeddings)
    user_emb = jax.random.normal(k3, (batch, emb_dim), dtype=jnp.float32) * 0.1
    item_emb = jax.random.normal(k4, (batch, emb_dim), dtype=jnp.float32) * 0.1

    loss, (bpr_val, reg_val) = bpr_loss_forward(
        pos_preds, neg_preds, user_emb, item_emb, lamb_reg=lamb_reg
    )
    loss = jax.block_until_ready(loss)

    # Pure-JAX reference check
    ref_bpr = -0.5 * jnp.sum(jnp.log(jax.nn.sigmoid(pos_preds - neg_preds))) / batch
    ref_reg = (lamb_reg * 0.5 * (jnp.sum(user_emb ** 2) + jnp.sum(item_emb ** 2))) / batch
    ref_loss = ref_bpr + ref_reg
    assert jnp.allclose(loss[0], ref_loss, rtol=1e-5, atol=1e-6), (loss, ref_loss)
    assert jnp.allclose(bpr_val, ref_bpr, rtol=1e-5, atol=1e-6), (bpr_val, ref_bpr)
    assert jnp.allclose(reg_val, ref_reg, rtol=1e-5, atol=1e-6), (reg_val, ref_reg)

    print("KERNEL_OK")
</pallas_src>

<mosaic_0001>
module attributes {stable_mosaic.version = 11 : i64} {
  func.func @_fused_bpr_kernel(%arg0: i32, %arg1: memref<8x128xf32, #tpu.memory_space<vmem>>, %arg2: memref<8x128xf32, #tpu.memory_space<vmem>>, %arg3: memref<8x128xf32, #tpu.memory_space<vmem>>, %arg4: memref<1x1xf32, #tpu.memory_space<smem>>, %arg5: memref<1x1xf32, #tpu.memory_space<smem>>, %arg6: memref<1x1xf32, #tpu.memory_space<vmem>>) attributes {dimension_semantics = [#tpu.dimension_semantics<arbitrary>], iteration_bounds = array<i64: 1>, scalar_prefetch = 0 : i64, scratch_operands = 1 : i64, tpu.core_type = #tpu.core_type<tc>, window_params = [{pipeline_mode = #tpu.pipeline_mode<synchronous>, transform_indices = @transform_0, window_bounds = array<i64: 8, 128>}, {pipeline_mode = #tpu.pipeline_mode<synchronous>, transform_indices = @transform_1, window_bounds = array<i64: 8, 128>}, {transform_indices = @transform_2, window_bounds = array<i64: 8, 128>}, {transform_indices = @transform_3, window_bounds = array<i64: 1, 1>}, {transform_indices = @transform_4, window_bounds = array<i64: 1, 1>}]} {
    %c0_i32 = arith.constant 0 : i32
    %0 = arith.cmpi eq, %arg0, %c0_i32 : i32
    %1 = arith.extui %0 : i1 to i32
    %c0_i32_0 = arith.constant 0 : i32
    %2 = arith.cmpi ne, %1, %c0_i32_0 : i32
    scf.if %2 {
      %c0_8 = arith.constant 0 : index
      %c0_9 = arith.constant 0 : index
      %16 = vector.load %arg1[%c0_8, %c0_9] : memref<8x128xf32, #tpu.memory_space<vmem>>, vector<8x128xf32>
      %c0_10 = arith.constant 0 : index
      %c0_11 = arith.constant 0 : index
      %17 = vector.load %arg2[%c0_10, %c0_11] : memref<8x128xf32, #tpu.memory_space<vmem>>, vector<8x128xf32>
      %18 = arith.subf %16, %17 : vector<8x128xf32>
      %cst_12 = arith.constant 0.000000e+00 : f32
      %19 = vector.broadcast %cst_12 : f32 to vector<8x128xf32>
      %20 = arith.subf %19, %18 : vector<8x128xf32>
      %cst_13 = arith.constant 0.000000e+00 : f32
      %21 = vector.broadcast %cst_13 : f32 to vector<8x128xf32>
      %22 = arith.maximumf %20, %21 : vector<8x128xf32>
      %23 = vector.broadcast %cst_13 : f32 to vector<8x128xf32>
      %24 = arith.subf %20, %23 : vector<8x128xf32>
      %25 = arith.cmpf one, %24, %24 : vector<8x128xf32>
      %26 = vector.broadcast %cst_13 : f32 to vector<8x128xf32>
      %27 = arith.addf %20, %26 : vector<8x128xf32>
      %28 = math.absf %24 : vector<8x128xf32>
      %cst_14 = arith.constant 0.000000e+00 : f32
      %29 = vector.broadcast %cst_14 : f32 to vector<8x128xf32>
      %30 = arith.subf %29, %28 : vector<8x128xf32>
      %31 = math.exp %30 : vector<8x128xf32>
      %32 = math.log1p %31 : vector<8x128xf32>
      %33 = arith.addf %22, %32 : vector<8x128xf32>
      %34 = arith.select %25, %27, %33 : vector<8x128xi1>, vector<8x128xf32>
      %cst_15 = arith.constant 0.000000e+00 : f32
      %35 = vector.broadcast %cst_15 : f32 to vector<8x128xf32>
      %36 = arith.subf %35, %34 : vector<8x128xf32>
      %37 = vector.shape_cast %36 : vector<8x128xf32> to vector<1x8x128xf32>
      %cst_16 = arith.constant dense<0.000000e+00> : vector<1xf32>
      %38 = vector.multi_reduction <add>, %37, %cst_16 [1, 2] : vector<1x8x128xf32> to vector<1xf32>
      %39 = vector.shape_cast %38 : vector<1xf32> to vector<1x1x1xf32>
      %40 = vector.extract %39[0, 0, 0] : f32 from vector<1x1x1xf32>
      %cst_17 = arith.constant -6.250000e-02 : f32
      %41 = arith.mulf %cst_17, %40 : f32
      %c0_18 = arith.constant 0 : index
      %c0_19 = arith.constant 0 : index
      %42 = memref.load %arg4[%c0_18, %c0_19] : memref<1x1xf32, #tpu.memory_space<smem>>
      memref.store %41, %arg4[%c0_18, %c0_19] : memref<1x1xf32, #tpu.memory_space<smem>>
      %cst_20 = arith.constant 0.000000e+00 : f32
      %43 = vector.broadcast %cst_20 : f32 to vector<1x1xf32>
      %c0_21 = arith.constant 0 : index
      %c0_22 = arith.constant 0 : index
      %44 = vector.load %arg6[%c0_21, %c0_22] : memref<1x1xf32, #tpu.memory_space<vmem>>, vector<1x1xf32>
      tpu.vector_store %arg6[%c0_21, %c0_22], %43 {strides = array<i32>} : memref<1x1xf32, #tpu.memory_space<vmem>>, vector<1x1xf32>,
    } else {
    }
    %c0 = arith.constant 0 : index
    %c0_1 = arith.constant 0 : index
    %3 = vector.load %arg3[%c0, %c0_1] : memref<8x128xf32, #tpu.memory_space<vmem>>, vector<8x128xf32>
    %c0_2 = arith.constant 0 : index
    %c0_3 = arith.constant 0 : index
    %4 = vector.load %arg6[%c0_2, %c0_3] : memref<1x1xf32, #tpu.memory_space<vmem>>, vector<1x1xf32>
    %5 = arith.mulf %3, %3 : vector<8x128xf32>
    %6 = vector.shape_cast %5 : vector<8x128xf32> to vector<1x8x128xf32>
    %cst = arith.constant dense<0.000000e+00> : vector<1xf32>
    %7 = vector.multi_reduction <add>, %6, %cst [1, 2] : vector<1x8x128xf32> to vector<1xf32>
    %8 = vector.shape_cast %7 : vector<1xf32> to vector<1x1x1xf32>
    %9 = vector.extract %8[0, 0, 0] : f32 from vector<1x1x1xf32>
    %10 = vector.broadcast %9 : f32 to vector<1x1xf32>
    %11 = arith.addf %4, %10 : vector<1x1xf32>
    %c0_4 = arith.constant 0 : index
    %c0_5 = arith.constant 0 : index
    %12 = vector.load %arg6[%c0_4, %c0_5] : memref<1x1xf32, #tpu.memory_space<vmem>>, vector<1x1xf32>
    tpu.vector_store %arg6[%c0_4, %c0_5], %11 {strides = array<i32>} : memref<1x1xf32, #tpu.memory_space<vmem>>, vector<1x1xf32>,
    %c0_i32_6 = arith.constant 0 : i32
    %13 = arith.cmpi eq, %arg0, %c0_i32_6 : i32
    %14 = arith.extui %13 : i1 to i32
    %c0_i32_7 = arith.constant 0 : i32
    %15 = arith.cmpi ne, %14, %c0_i32_7 : i32
    scf.if %15 {
      %c0_8 = arith.constant 0 : index
      %c0_9 = arith.constant 0 : index
      %16 = vector.load %arg6[%c0_8, %c0_9] : memref<1x1xf32, #tpu.memory_space<vmem>>, vector<1x1xf32>
      %cst_10 = arith.constant 6.250000e-04 : f32
      %17 = vector.broadcast %cst_10 : f32 to vector<1x1xf32>
      %18 = arith.mulf %16, %17 : vector<1x1xf32>
      %19 = vector.shape_cast %18 : vector<1x1xf32> to vector<1x1x1xf32>
      %cst_11 = arith.constant dense<0.000000e+00> : vector<1xf32>
      %20 = vector.multi_reduction <add>, %19, %cst_11 [1, 2] : vector<1x1x1xf32> to vector<1xf32>
      %21 = vector.shape_cast %20 : vector<1xf32> to vector<1x1x1xf32>
      %22 = vector.extract %21[0, 0, 0] : f32 from vector<1x1x1xf32>
      %c0_12 = arith.constant 0 : index
      %c0_13 = arith.constant 0 : index
      %23 = memref.load %arg5[%c0_12, %c0_13] : memref<1x1xf32, #tpu.memory_space<smem>>
      memref.store %22, %arg5[%c0_12, %c0_13] : memref<1x1xf32, #tpu.memory_space<smem>>
    } else {
    }
    return
  }
  func.func @transform_0(%arg0: i32) -> (i32, i32) {
    %c0_i32 = arith.constant 0 : i32
    %c0_i32_0 = arith.constant 0 : i32
    %c0_i32_1 = arith.constant 0 : i32
    return %c0_i32, %c0_i32_0 : i32, i32
  }
  func.func @transform_1(%arg0: i32) -> (i32, i32) {
    %c0_i32 = arith.constant 0 : i32
    %c0_i32_0 = arith.constant 0 : i32
    %c0_i32_1 = arith.constant 0 : i32
    return %c0_i32, %c0_i32_0 : i32, i32
  }
  func.func @transform_2(%arg0: i32) -> (i32, i32) {
    %c0_i32 = arith.constant 0 : i32
    %c0_i32_0 = arith.constant 0 : i32
    return %arg0, %c0_i32 : i32, i32
  }
  func.func @transform_3(%arg0: i32) -> (i32, i32) {
    %c0_i32 = arith.constant 0 : i32
    %c0_i32_0 = arith.constant 0 : i32
    %c0_i32_1 = arith.constant 0 : i32
    return %c0_i32, %c0_i32_0 : i32, i32
  }
  func.func @transform_4(%arg0: i32) -> (i32, i32) {
    %c0_i32 = arith.constant 0 : i32
    %c0_i32_0 = arith.constant 0 : i32
    %c0_i32_1 = arith.constant 0 : i32
    return %c0_i32, %c0_i32_0 : i32, i32
  }
}

</mosaic_0001>

<llo_original>
// kernel: bpr_loss_forward.1
$region0: #{bpr_loss_forward.1}
  #allocation0 [shape = 'u32[]', space=smem, size = 0x4, offset = 0x4, fixed_abs, tag = 'smem constant byte address 0x4 - core index']
  #allocation1 [shape = 'u32[72,128]{1,0:T(1,128)}', space=vmem, size = 0x9000, scoped, tag = 'internal scratch']
  #allocation2 [shape = 'f32[1,1]{1,0:T(1,128)}', space=vmem, size = 0x200, scoped, tag = 'scratch operand']
  %s0 = inlined_call_operand.vmem [shape: f32[8,128], index: 0, kind: input, shape index: {}]
  %s1 = inlined_call_operand.vmem [shape: f32[8,128], index: 1, kind: input, shape index: {}]
  %s2 = inlined_call_operand.vmem [shape: f32[8,128], index: 2, kind: input, shape index: {}]
  %s3 = inlined_call_operand.hbm [shape: f32[1,1], index: 3, kind: output, shape index: {0}]
  %s4 = inlined_call_operand.hbm [shape: f32[1,1], index: 4, kind: output, shape index: {1}]
  %5 = xla_tuple %s3, %s4
  %s6 = sld [smem:[#allocation0]]
  $region38: #{bpr_loss_forward.1} parent=0
    _
  %s8 = ssub.s32 1, %s6
  %s9 = scalar_select 0, %s8, %s6
  $region1: #{bpr_loss_forward.1} parent=0
    #allocation3 [shape = 'u8[512]{0}', space=smem, size = 0x200, scoped, tag = 'output window, operand 0, single buffered']
    #allocation4 [shape = 's32[1]{0}', space=sflag, size = 0x4, scoped, tag = 'scoped memory for bpr_loss_forward.1']
    #allocation5 [shape = 'u8[512]{0}', space=smem, size = 0x200, scoped, tag = 'output window, operand 1, single buffered']
    #allocation6 [shape = 's32[1]{0}', space=sflag, size = 0x4, scoped, tag = 'scoped memory for bpr_loss_forward.1']
    %10 = vsyncpa [#allocation4], 0
    %11 = vsyncpa [#allocation6], 0
    // Predicated region
    $region2: #{bpr_loss_forward.1} parent=1 // pred_check
      _
    $region3: #{bpr_loss_forward.1} parent=1 // pred_check_branch
      %13 = sbr.rel (0) target = $region5
    $region4: #{bpr_loss_forward.1} parent=1 // pred_region
      _
    $region5: #{bpr_loss_forward.1} parent=1 // pred_fallthru
      _
    // Predicated region
    $region6: #{bpr_loss_forward.1} parent=1 // pred_check
      _
    $region7: #{bpr_loss_forward.1} parent=1 // pred_check_branch
      %15 = sbr.rel (0) target = $region9
    $region8: #{bpr_loss_forward.1} parent=1 // pred_region
      _
    $region9: #{bpr_loss_forward.1} parent=1 // pred_fallthru
      _
    // Predicated region
    $region10: #{bpr_loss_forward.1} parent=1 // pred_check
      _
    $region11: #{bpr_loss_forward.1} parent=1 // pred_check_branch
      %17 = sbr.rel (0) target = $region13
    $region12: #{bpr_loss_forward.1} parent=1 // pred_region
      _
    $region13: #{bpr_loss_forward.1} parent=1 // pred_fallthru
      _
    %p18 = scmp.eq.s32.totalorder 0, 0
    // Predicated region
    $region14: #{bpr_loss_forward.1} parent=1 // pred_check
      %p19 = pneg %p18
    $region15: #{bpr_loss_forward.1} parent=1 // pred_check_branch
      %21 = sbr.rel (%p19) target = $region17
    $region16: #{bpr_loss_forward.1} parent=1 // pred_region
      %v22 = vld [vmem:[%s0] sm:$0xff]
      %v23 = vld [vmem:[%s1] sm:$0xff]
      %v24 = vsub.f32 %v22, %v23
      %v25 = vsub.f32 0.0, %v24
      %v26 = vmax.f32 %v25, 0.0
      %vm27 = vcmp.ne.f32.partialorder %v25, %v25
      %v28 = vadd.f32 %v25, 0.0
      %v29 = vand.u32 2147483647, %v25
      %v30 = vsub.f32 0.0, %v29
      %v31 = vmul.f32 %v30, 1.442695
      %v32 = vpow.pop %v31
      %v33 = vadd.f32 %v32, 1.0
      %v34 = vlog2.pop %v33
      %v35 = vmul.f32 %v34, 0.6931472
      %v36 = vmul.f32 -0.5, %v32
      %v37 = vadd.f32 %v36, 1.0
      %v38 = vmul.f32 %v37, %v32
      %v39 = vand.u32 2147483647, %v32
      %vm40 = vcmp.lt.f32.partialorder %v39, 0.0004427343
      %v41 = vsel %vm40, %v38, %v35
      %v42 = vadd.f32 %v26, %v41
      %v43 = vsel %vm27, %v28, %v42
      %v44 = vsub.f32 0.0, %v43
      %45 = vadd.xlane.f32.xlu0 %v44
      %v46 = vpop.xlane.xlu0 %45
      %v47 = vrot.slane %v46, 4
      %v48 = vadd.f32 %v46, %v47
      %v49 = vrot.slane %v48, 2
      %v50 = vadd.f32 %v48, %v49
      %v51 = vrot.slane %v50, 1
      %v52 = vadd.f32 %v50, %v51
      %s53 = vtos %v52
      %s54 = smul.f32 %s53, -0.0625
      %s55 = scalar_lea.smem [#allocation3], 0
      %56 = sst [smem:[%s55]] %s54
      %vm57 = vcmask 0
      %58 = vst.msk [vmem:[#allocation2] sm:$0x1] %vm57, 0.0
    $region17: #{bpr_loss_forward.1} parent=1 // pred_fallthru
      _
    %v59 = vld [vmem:[%s2] sm:$0xff]
    %v60 = vld [vmem:[#allocation2] sm:$0x1]
    %v61 = vmul.f32 %v59, %v59
    %62 = vadd.xlane.f32.xlu0 %v61
    %v63 = vpop.xlane.xlu0 %62
    %v64 = vrot.slane %v63, 4
    %v65 = vadd.f32 %v63, %v64
    %v66 = vrot.slane %v65, 2
    %v67 = vadd.f32 %v65, %v66
    %v68 = vrot.slane %v67, 1
    %v69 = vadd.f32 %v67, %v68
    %s70 = vtos %v69
    %v71 = vstv %s70
    %v72 = vadd.f32 %v60, %v71
    %vm73 = vcmask 0
    %74 = vst.msk [vmem:[#allocation2] sm:$0x1] %vm73, %v72
    // Predicated region
    $region18: #{bpr_loss_forward.1} parent=1 // pred_check
      %p75 = pneg %p18
    $region19: #{bpr_loss_forward.1} parent=1 // pred_check_branch
      %77 = sbr.rel (%p75) target = $region21
    $region20: #{bpr_loss_forward.1} parent=1 // pred_region
      %v78 = vld [vmem:[#allocation2] sm:$0x1]
      %v79 = vmul.f32 %v78, 0.000625
      %v80 = vadd.f32 %v79, 0.0
      %s81 = vtos %v80
      %s82 = scalar_lea.smem [#allocation5], 0
      %83 = sst [smem:[%s82]] %s81
    $region21: #{bpr_loss_forward.1} parent=1 // pred_fallthru
      _
    // Predicated region
    $region22: #{bpr_loss_forward.1} parent=1 // pred_check
      _
    $region23: #{bpr_loss_forward.1} parent=1 // pred_check_branch
      %85 = sbr.rel (0) target = $region25
    $region24: #{bpr_loss_forward.1} parent=1 // pred_region
      %87 = vsyncadd [#allocation4], 0
      %s89 = sshll.u32 %s3, 4
      %s90 = int_to_ptr.hbm [resolvable:$true] %s89
      %92 = dma.smem_to_hbm [#allocation3], 16, %s90, [#allocation4]
    $region25: #{bpr_loss_forward.1} parent=1 // pred_fallthru
      _
    // Predicated region
    $region26: #{bpr_loss_forward.1} parent=1 // pred_check
      _
    $region27: #{bpr_loss_forward.1} parent=1 // pred_check_branch
      %94 = sbr.rel (0) target = $region29
    $region28: #{bpr_loss_forward.1} parent=1 // pred_region
      %96 = vsyncadd [#allocation6], 0
      %s98 = sshll.u32 %s4, 4
      %s99 = int_to_ptr.hbm [resolvable:$true] %s98
      %101 = dma.smem_to_hbm [#allocation5], 16, %s99, [#allocation6]
    $region29: #{bpr_loss_forward.1} parent=1 // pred_fallthru
      _
    // Predicated region
    $region30: #{bpr_loss_forward.1} parent=1 // pred_check
      _
    $region31: #{bpr_loss_forward.1} parent=1 // pred_check_branch
      %103 = sbr.rel (0) target = $region33
    $region32: #{bpr_loss_forward.1} parent=1 // pred_region
      %105 = dma.done [#allocation4], 16
    $region33: #{bpr_loss_forward.1} parent=1 // pred_fallthru
      _
    // Predicated region
    $region34: #{bpr_loss_forward.1} parent=1 // pred_check
      _
    $region35: #{bpr_loss_forward.1} parent=1 // pred_check_branch
      %107 = sbr.rel (0) target = $region37
    $region36: #{bpr_loss_forward.1} parent=1 // pred_region
      %109 = dma.done [#allocation6], 16
    $region37: #{bpr_loss_forward.1} parent=1 // pred_fallthru
      _
    %110 = sfence
    %111 = vsyncpa [#allocation4], 1
    %112 = vsyncpa [#allocation6], 1

</llo_original>
